<compile_context>
chip_gen: v7x
topology: tpu7x:2x2x1
jax: 0.10.0
libtpu: 0.0.40
codegen_flags: <defaults>
</compile_context>

<pallas_src>
import jax
import jax.numpy as jnp
from jax import lax
from jax.experimental import pallas as pl
from jax.experimental.pallas import tpu as pltpu

LANE = 128                       # lane width
SUB = 8                          # sublane tile height (f32)
CHUNK_R = 64                     # rows per inner compute chunk (8 sublane tiles)
PIPE_VMEM_BYTES = 8 * 1024 * 1024  # budget for the double-buffered input blocks
PAD_LOGIT = -1.0e4               # sigmoid == 0 and bce == 0 (with t == 0) -> contributes 0


def _round_up(a, b):
    return (a + b - 1) // b * b


def _sublane_granularity(dtype):
    """Second-minor block granularity for a storage dtype (8 * 32-bit packing)."""
    return SUB * max(1, 4 // jnp.dtype(dtype).itemsize)


def _make_kernel(block_r, rows_total, needs_mask, chunk_r):
    """Build the per-grid-step kernel (all tiling parameters are static)."""
    nchunks = block_r // chunk_r
    tail_r = block_r - nchunks * chunk_r          # static, multiple of 8 by construction

    def chunk_partials(y_ref, t_ref, step, r0, nrows):
        # nrows is a static multiple of 8; r0 may be dynamic.
        x = y_ref[pl.ds(r0, nrows), :].astype(jnp.float32)
        t = t_ref[pl.ds(r0, nrows), :].astype(jnp.float32)

        if needs_mask:
            # Only generated when the last grid block is ragged: replace stale
            # VMEM rows (>= rows_total) by exactly-zero-contribution values
            # BEFORE any math (NaN/Inf safe).
            row = (step * block_r + r0
                   + lax.broadcasted_iota(jnp.int32, (nrows, LANE), 0))
            valid = row < rows_total
            x = jnp.where(valid, x, PAD_LOGIT)
            t = jnp.where(valid, t, 0.0)

        # One exp per element, reused by BCE and sigmoid.
        e = jnp.exp(-jnp.abs(x))
        # Stable BCE-with-logits: max(x,0) - x*t + log1p(exp(-|x|))
        bce = jnp.maximum(x, 0.0) - x * t + jnp.log1p(e)
        # sigmoid via EUP approximate reciprocal + 1 Newton step (~f32 accurate).
        d = 1.0 + e
        r = pl.reciprocal(d, approx=True)
        r = r * (2.0 - d * r)
        p = jnp.where(x >= 0.0, r, e * r)

        def fold(v):
            # (nrows,128) -> (8,128): pure vreg adds (no cross-lane/sublane work).
            return jnp.sum(v.reshape(nrows // SUB, SUB, LANE), axis=0)

        return fold(bce), fold(p * t), fold(p), fold(t)

    def kernel(y_ref, t_ref, acc_ref):
        step = pl.program_id(0)
        zero = jnp.zeros((SUB, LANE), jnp.float32)

        def body(j, carry):
            r0 = pl.multiple_of(j * chunk_r, SUB)
            parts = chunk_partials(y_ref, t_ref, step, r0, chunk_r)
            return tuple(c + q for c, q in zip(carry, parts))

        # Partial sums carried in registers; acc_ref touched once per grid step.
        carry = lax.fori_loop(0, nchunks, body, (zero, zero, zero, zero))
        if tail_r:
            parts = chunk_partials(y_ref, t_ref, step, nchunks * chunk_r, tail_r)
            carry = tuple(c + q for c, q in zip(carry, parts))

        @pl.when(step == 0)
        def _():
            acc_ref[...] = jnp.zeros_like(acc_ref)

        acc_ref[0] += carry[0]
        acc_ref[1] += carry[1]
        acc_ref[2] += carry[2]
        acc_ref[3] += carry[3]

    return kernel


def bce_and_dice_loss_with_logits(y, t, *, alpha=0.5, smooth=1.0, eps=1e-7):
    """y, t: NCHW arrays of identical shape (binary segmentation, C == 1)."""
    assert y.shape == t.shape
    n = int(y.size)
    assert n > 0

    yf = y.reshape(-1)
    tf = t.reshape(-1)

    # Free reshape to (rows, 128).  Only when n is not a multiple of 8*128 do we
    # pad (<= 1023 elements) so the reshape is legal and every compute chunk is
    # a whole number of sublane tiles; typical NCHW shapes take the zero-copy path.
    n_pad = _round_up(n, SUB * LANE)
    if n_pad != n:
        pad = n_pad - n
        yf = jnp.pad(yf, (0, pad), constant_values=PAD_LOGIT)
        tf = jnp.pad(tf, (0, pad), constant_values=0)

    rows = n_pad // LANE                      # multiple of 8
    y2 = yf.reshape(rows, LANE)
    t2 = tf.reshape(rows, LANE)

    # Block sizing: as big as the VMEM pipeline budget allows, rounded to the
    # dtype sublane granularity, and fitted to `rows` so fake work is < 8 rows/step.
    g = max(_sublane_granularity(y2.dtype), _sublane_granularity(t2.dtype))
    row_bytes = LANE * (y2.dtype.itemsize + t2.dtype.itemsize) * 2   # x2 pipeline buffers
    max_block_r = max(g, (PIPE_VMEM_BYTES // row_bytes) // g * g)

    nsteps = pl.cdiv(rows, max_block_r)
    block_r = _round_up(pl.cdiv(rows, nsteps), g)
    if block_r >= rows:                       # single full-extent block (always legal)
        nsteps, block_r = 1, rows
    needs_mask = (nsteps * block_r != rows)   # static: ragged last block?
    chunk_r = min(CHUNK_R, block_r)

    kernel = _make_kernel(block_r, rows, needs_mask, chunk_r)

    cost = pl.CostEstimate(
        flops=18 * n_pad,
        transcendentals=3 * n_pad,
        bytes_accessed=n_pad * (y2.dtype.itemsize + t2.dtype.itemsize)
        + 4 * SUB * LANE * 4,
    )

    partials = pl.pallas_call(
        kernel,
        out_shape=jax.ShapeDtypeStruct((4, SUB, LANE), jnp.float32),
        grid_spec=pltpu.PrefetchScalarGridSpec(
            num_scalar_prefetch=0,
            grid=(nsteps,),
            in_specs=[pl.BlockSpec((block_r, LANE), lambda i: (i, 0)),
                      pl.BlockSpec((block_r, LANE), lambda i: (i, 0))],
            out_specs=pl.BlockSpec((4, SUB, LANE), lambda i: (0, 0, 0)),
        ),
        compiler_params=pltpu.CompilerParams(
            dimension_semantics=("arbitrary",),
            vmem_limit_bytes=32 * 1024 * 1024,
        ),
        cost_estimate=cost,
    )(y2, t2)

    # Tiny epilogue in plain JAX: cross-lane reduction of 16 KiB of partials
    # plus the scalar bce/dice combine.
    sums = jnp.sum(partials, axis=(1, 2))                       # (4,)
    s_bce, s_inter, s_p, s_t = sums[0], sums[1], sums[2], sums[3]

    bce_mean = s_bce / n
    dice_score = (2.0 * s_inter + smooth) / jnp.maximum(s_p + s_t + smooth, eps)
    dice_loss = (1.0 - dice_score) * (s_t > 0.0).astype(jnp.float32)
    return (1.0 - alpha) * bce_mean + alpha * dice_loss


def _reference(y, t, *, alpha=0.5, smooth=1.0, eps=1e-7):
    """Pure-JAX reference mirroring SoftBCEWithLogitsLoss + DiceLoss('binary')."""
    x = y.astype(jnp.float32)
    tt = t.astype(jnp.float32)
    bce = jnp.mean(jnp.maximum(x, 0.0) - x * tt + jnp.log1p(jnp.exp(-jnp.abs(x))))
    p = jax.nn.sigmoid(x)
    inter = jnp.sum(p * tt)
    card = jnp.sum(p) + jnp.sum(tt)
    score = (2.0 * inter + smooth) / jnp.maximum(card + smooth, eps)
    dice = (1.0 - score) * (jnp.sum(tt) > 0).astype(jnp.float32)
    return (1.0 - alpha) * bce + alpha * dice


if __name__ == "__main__":
    key = jax.random.PRNGKey(0)
    k1, k2, k3, k4 = jax.random.split(key, 4)

    def check(y, t, name):
        out = jax.block_until_ready(
            bce_and_dice_loss_with_logits(y, t, alpha=0.5, smooth=1.0))
        ref = _reference(y, t, alpha=0.5, smooth=1.0)
        assert jnp.allclose(out, ref, rtol=1e-5, atol=1e-5), (name, out, ref)

    # 1) Small NCHW (C==1) logits + {0,1} targets: exercises the tiny-pad path.
    y = jax.random.normal(k1, (2, 1, 16, 16), dtype=jnp.float32)
    t = (jax.random.uniform(k2, (2, 1, 16, 16)) > 0.5).astype(jnp.float32)
    check(y, t, "small")

    # 2) Multi-block accumulation, exact tiling (no pad, no mask): 9216 rows / 3 steps.
    y = jax.random.normal(k3, (2, 1, 768, 768), dtype=jnp.float32)
    t = (jax.random.uniform(k4, (2, 1, 768, 768)) > 0.5).astype(jnp.float32)
    check(y, t, "multi_step")

    # 3) Ragged last block: 4104 rows -> 2 steps of 2056, in-kernel row mask.
    y = jax.random.normal(k1, (2, 1, 513, 512), dtype=jnp.float32)
    t = (jax.random.uniform(k2, (2, 1, 513, 512)) > 0.5).astype(jnp.float32)
    check(y, t, "masked_tail")

    # 4) bf16 streaming (half the HBM bytes), cast to f32 in-kernel.
    y = jax.random.normal(k3, (2, 1, 384, 384), dtype=jnp.float32).astype(jnp.bfloat16)
    t = (jax.random.uniform(k4, (2, 1, 384, 384)) > 0.5).astype(jnp.bfloat16)
    check(y, t, "bf16")

    print("KERNEL_OK")
</pallas_src>

<mosaic_0001>
module attributes {stable_mosaic.version = 11 : i64} {
  func.func @kernel(%arg0: i32, %arg1: memref<8x128xf32, #tpu.memory_space<vmem>>, %arg2: memref<8x128xf32, #tpu.memory_space<vmem>>, %arg3: memref<4x8x128xf32, #tpu.memory_space<vmem>>) attributes {dimension_semantics = [#tpu.dimension_semantics<arbitrary>], iteration_bounds = array<i64: 1>, scalar_prefetch = 0 : i64, scratch_operands = 0 : i64, tpu.core_type = #tpu.core_type<tc>, window_params = [{transform_indices = @transform_0, window_bounds = array<i64: 8, 128>}, {transform_indices = @transform_1, window_bounds = array<i64: 8, 128>}, {pipeline_mode = #tpu.pipeline_mode<synchronous>, transform_indices = @transform_2, window_bounds = array<i64: 4, 8, 128>}]} {
    %cst = arith.constant 0.000000e+00 : f32
    %0 = vector.broadcast %cst : f32 to vector<8x128xf32>
    %c0_i32 = arith.constant 0 : i32
    %c8_i32 = arith.constant 8 : i32
    %1 = arith.muli %c0_i32, %c8_i32 : i32
    %2 = tpu.assume_multiple %1, 8 : i32
    %3 = arith.index_cast %2 : i32 to index
    %c0 = arith.constant 0 : index
    %4 = vector.load %arg1[%3, %c0] : memref<8x128xf32, #tpu.memory_space<vmem>>, vector<8x128xf32>
    %5 = arith.index_cast %2 : i32 to index
    %c0_0 = arith.constant 0 : index
    %6 = vector.load %arg2[%5, %c0_0] : memref<8x128xf32, #tpu.memory_space<vmem>>, vector<8x128xf32>
    %7 = math.absf %4 : vector<8x128xf32>
    %cst_1 = arith.constant 0.000000e+00 : f32
    %8 = vector.broadcast %cst_1 : f32 to vector<8x128xf32>
    %9 = arith.subf %8, %7 : vector<8x128xf32>
    %10 = math.exp %9 : vector<8x128xf32>
    %cst_2 = arith.constant 0.000000e+00 : f32
    %11 = vector.broadcast %cst_2 : f32 to vector<8x128xf32>
    %12 = arith.maximumf %4, %11 : vector<8x128xf32>
    %13 = arith.mulf %4, %6 : vector<8x128xf32>
    %14 = arith.subf %12, %13 : vector<8x128xf32>
    %15 = math.log1p %10 : vector<8x128xf32>
    %16 = arith.addf %14, %15 : vector<8x128xf32>
    %cst_3 = arith.constant 1.000000e+00 : f32
    %17 = vector.broadcast %cst_3 : f32 to vector<8x128xf32>
    %18 = arith.addf %17, %10 : vector<8x128xf32>
    %19 = tpu.reciprocal %18 {approx = true} : vector<8x128xf32> -> vector<8x128xf32>
    %20 = arith.mulf %18, %19 : vector<8x128xf32>
    %cst_4 = arith.constant 2.000000e+00 : f32
    %21 = vector.broadcast %cst_4 : f32 to vector<8x128xf32>
    %22 = arith.subf %21, %20 : vector<8x128xf32>
    %23 = arith.mulf %19, %22 : vector<8x128xf32>
    %cst_5 = arith.constant 0.000000e+00 : f32
    %24 = vector.broadcast %cst_5 : f32 to vector<8x128xf32>
    %25 = arith.cmpf oge, %4, %24 : vector<8x128xf32>
    %26 = arith.mulf %10, %23 : vector<8x128xf32>
    %27 = arith.select %25, %23, %26 : vector<8x128xi1>, vector<8x128xf32>
    %28 = vector.shape_cast %16 : vector<8x128xf32> to vector<1x8x128xf32>
    %cst_6 = arith.constant dense<0.000000e+00> : vector<8x128xf32>
    %29 = vector.multi_reduction <add>, %28, %cst_6 [0] : vector<1x8x128xf32> to vector<8x128xf32>
    %30 = arith.mulf %27, %6 : vector<8x128xf32>
    %31 = vector.shape_cast %30 : vector<8x128xf32> to vector<1x8x128xf32>
    %cst_7 = arith.constant dense<0.000000e+00> : vector<8x128xf32>
    %32 = vector.multi_reduction <add>, %31, %cst_7 [0] : vector<1x8x128xf32> to vector<8x128xf32>
    %33 = vector.shape_cast %27 : vector<8x128xf32> to vector<1x8x128xf32>
    %cst_8 = arith.constant dense<0.000000e+00> : vector<8x128xf32>
    %34 = vector.multi_reduction <add>, %33, %cst_8 [0] : vector<1x8x128xf32> to vector<8x128xf32>
    %35 = vector.shape_cast %6 : vector<8x128xf32> to vector<1x8x128xf32>
    %cst_9 = arith.constant dense<0.000000e+00> : vector<8x128xf32>
    %36 = vector.multi_reduction <add>, %35, %cst_9 [0] : vector<1x8x128xf32> to vector<8x128xf32>
    %37 = arith.addf %0, %29 : vector<8x128xf32>
    %38 = arith.addf %0, %32 : vector<8x128xf32>
    %39 = arith.addf %0, %34 : vector<8x128xf32>
    %40 = arith.addf %0, %36 : vector<8x128xf32>
    %c1_i32 = arith.constant 1 : i32
    %c0_i32_10 = arith.constant 0 : i32
    %41 = arith.cmpi eq, %arg0, %c0_i32_10 : i32
    %42 = arith.extui %41 : i1 to i32
    %c0_i32_11 = arith.constant 0 : i32
    %43 = arith.cmpi ne, %42, %c0_i32_11 : i32
    scf.if %43 {
      %cst_33 = arith.constant 0.000000e+00 : f32
      %68 = vector.broadcast %cst_33 : f32 to vector<4x8x128xf32>
      %c0_34 = arith.constant 0 : index
      %c0_35 = arith.constant 0 : index
      %c0_36 = arith.constant 0 : index
      %69 = vector.load %arg3[%c0_34, %c0_35, %c0_36] : memref<4x8x128xf32, #tpu.memory_space<vmem>>, vector<4x8x128xf32>
      tpu.vector_store %arg3[%c0_34, %c0_35, %c0_36], %68 {strides = array<i32>} : memref<4x8x128xf32, #tpu.memory_space<vmem>>, vector<4x8x128xf32>,
    } else {
    }
    %c0_12 = arith.constant 0 : index
    %c0_13 = arith.constant 0 : index
    %c0_14 = arith.constant 0 : index
    %44 = vector.load %arg3[%c0_12, %c0_13, %c0_14] : memref<4x8x128xf32, #tpu.memory_space<vmem>>, vector<1x8x128xf32>
    %45 = vector.shape_cast %44 : vector<1x8x128xf32> to vector<8x128xf32>
    %46 = arith.addf %45, %37 : vector<8x128xf32>
    %c0_15 = arith.constant 0 : index
    %c0_16 = arith.constant 0 : index
    %c0_17 = arith.constant 0 : index
    %47 = vector.load %arg3[%c0_15, %c0_16, %c0_17] : memref<4x8x128xf32, #tpu.memory_space<vmem>>, vector<1x8x128xf32>
    %48 = vector.shape_cast %47 : vector<1x8x128xf32> to vector<8x128xf32>
    %49 = vector.shape_cast %46 : vector<8x128xf32> to vector<1x8x128xf32>
    tpu.vector_store %arg3[%c0_15, %c0_16, %c0_17], %49 {strides = array<i32>} : memref<4x8x128xf32, #tpu.memory_space<vmem>>, vector<1x8x128xf32>,
    %c1 = arith.constant 1 : index
    %c0_18 = arith.constant 0 : index
    %c0_19 = arith.constant 0 : index
    %50 = vector.load %arg3[%c1, %c0_18, %c0_19] : memref<4x8x128xf32, #tpu.memory_space<vmem>>, vector<1x8x128xf32>
    %51 = vector.shape_cast %50 : vector<1x8x128xf32> to vector<8x128xf32>
    %52 = arith.addf %51, %38 : vector<8x128xf32>
    %c1_20 = arith.constant 1 : index
    %c0_21 = arith.constant 0 : index
    %c0_22 = arith.constant 0 : index
    %53 = vector.load %arg3[%c1_20, %c0_21, %c0_22] : memref<4x8x128xf32, #tpu.memory_space<vmem>>, vector<1x8x128xf32>
    %54 = vector.shape_cast %53 : vector<1x8x128xf32> to vector<8x128xf32>
    %55 = vector.shape_cast %52 : vector<8x128xf32> to vector<1x8x128xf32>
    tpu.vector_store %arg3[%c1_20, %c0_21, %c0_22], %55 {strides = array<i32>} : memref<4x8x128xf32, #tpu.memory_space<vmem>>, vector<1x8x128xf32>,
    %c2 = arith.constant 2 : index
    %c0_23 = arith.constant 0 : index
    %c0_24 = arith.constant 0 : index
    %56 = vector.load %arg3[%c2, %c0_23, %c0_24] : memref<4x8x128xf32, #tpu.memory_space<vmem>>, vector<1x8x128xf32>
    %57 = vector.shape_cast %56 : vector<1x8x128xf32> to vector<8x128xf32>
    %58 = arith.addf %57, %39 : vector<8x128xf32>
    %c2_25 = arith.constant 2 : index
    %c0_26 = arith.constant 0 : index
    %c0_27 = arith.constant 0 : index
    %59 = vector.load %arg3[%c2_25, %c0_26, %c0_27] : memref<4x8x128xf32, #tpu.memory_space<vmem>>, vector<1x8x128xf32>
    %60 = vector.shape_cast %59 : vector<1x8x128xf32> to vector<8x128xf32>
    %61 = vector.shape_cast %58 : vector<8x128xf32> to vector<1x8x128xf32>
    tpu.vector_store %arg3[%c2_25, %c0_26, %c0_27], %61 {strides = array<i32>} : memref<4x8x128xf32, #tpu.memory_space<vmem>>, vector<1x8x128xf32>,
    %c3 = arith.constant 3 : index
    %c0_28 = arith.constant 0 : index
    %c0_29 = arith.constant 0 : index
    %62 = vector.load %arg3[%c3, %c0_28, %c0_29] : memref<4x8x128xf32, #tpu.memory_space<vmem>>, vector<1x8x128xf32>
    %63 = vector.shape_cast %62 : vector<1x8x128xf32> to vector<8x128xf32>
    %64 = arith.addf %63, %40 : vector<8x128xf32>
    %c3_30 = arith.constant 3 : index
    %c0_31 = arith.constant 0 : index
    %c0_32 = arith.constant 0 : index
    %65 = vector.load %arg3[%c3_30, %c0_31, %c0_32] : memref<4x8x128xf32, #tpu.memory_space<vmem>>, vector<1x8x128xf32>
    %66 = vector.shape_cast %65 : vector<1x8x128xf32> to vector<8x128xf32>
    %67 = vector.shape_cast %64 : vector<8x128xf32> to vector<1x8x128xf32>
    tpu.vector_store %arg3[%c3_30, %c0_31, %c0_32], %67 {strides = array<i32>} : memref<4x8x128xf32, #tpu.memory_space<vmem>>, vector<1x8x128xf32>,
    return
  }
  func.func @transform_0(%arg0: i32) -> (i32, i32) {
    %c0_i32 = arith.constant 0 : i32
    %c0_i32_0 = arith.constant 0 : i32
    return %arg0, %c0_i32 : i32, i32
  }
  func.func @transform_1(%arg0: i32) -> (i32, i32) {
    %c0_i32 = arith.constant 0 : i32
    %c0_i32_0 = arith.constant 0 : i32
    return %arg0, %c0_i32 : i32, i32
  }
  func.func @transform_2(%arg0: i32) -> (i32, i32, i32) {
    %c0_i32 = arith.constant 0 : i32
    %c0_i32_0 = arith.constant 0 : i32
    %c0_i32_1 = arith.constant 0 : i32
    %c0_i32_2 = arith.constant 0 : i32
    return %c0_i32, %c0_i32_0, %c0_i32_1 : i32, i32, i32
  }
}

</mosaic_0001>

<llo_original>
// kernel: tpu_custom_call.1
$region0: #{tpu_custom_call.1}
  #allocation0 [shape = 'u32[]', space=smem, size = 0x4, offset = 0x4, fixed_abs, tag = 'smem constant byte address 0x4 - core index']
  #allocation1 [shape = 'u32[144,128]{1,0:T(1,128)}', space=vmem, size = 0x12000, scoped, tag = 'internal scratch']
  %s0 = inlined_call_operand.hbm [shape: f32[8,128], index: 0, kind: input, shape index: {}]
  %s1 = inlined_call_operand.hbm [shape: f32[8,128], index: 1, kind: input, shape index: {}]
  %s2 = inlined_call_operand.hbm [shape: f32[4,8,128], index: 2, kind: output, shape index: {}]
  %s3 = sld [smem:[#allocation0]]
  $region30: #{tpu_custom_call.1} parent=0
    _
  %s5 = ssub.s32 1, %s3
  %s6 = scalar_select 0, %s5, %s3
  $region1: #{tpu_custom_call.1} parent=0
    #allocation2 [shape = 'u8[4096]{0}', space=vmem, size = 0x1000, scoped, tag = 'input window, operand 0, single buffered']
    #allocation3 [shape = 's32[1]{0}', space=sflag, size = 0x4, scoped, tag = 'scoped memory for tpu_custom_call.1']
    #allocation4 [shape = 's32[1]{0}', space=sflag, size = 0x4, scoped, tag = 'scoped memory for tpu_custom_call.1']
    #allocation5 [shape = 'u8[4096]{0}', space=vmem, size = 0x1000, scoped, tag = 'input window, operand 1, single buffered']
    #allocation6 [shape = 's32[1]{0}', space=sflag, size = 0x4, scoped, tag = 'scoped memory for tpu_custom_call.1']
    #allocation7 [shape = 'u8[16384]{0}', space=vmem, size = 0x4000, scoped, tag = 'output window, operand 0, single buffered']
    %7 = vsyncpa [#allocation3], 0
    %8 = vsyncpa [#allocation6], 0
    %9 = vsyncpa [#allocation4], 0
    // Predicated region
    $region2: #{tpu_custom_call.1} parent=1 // pred_check
      _
    $region3: #{tpu_custom_call.1} parent=1 // pred_check_branch
      %11 = sbr.rel (0) target = $region5
    $region4: #{tpu_custom_call.1} parent=1 // pred_region
      %s13 = ssub.s32 128, 128
      %14 = vsyncadd [#allocation3], %s13
      %s16 = sshll.u32 [#allocation2], 4
      %s17 = int_to_ptr.vmem [resolvable:$true] %s16
      %19 = dma.hbm_to_vmem [thread:$0]  %s0, 128, %s17, [#allocation3]
    $region5: #{tpu_custom_call.1} parent=1 // pred_fallthru
      _
    // Predicated region
    $region6: #{tpu_custom_call.1} parent=1 // pred_check
      _
    $region7: #{tpu_custom_call.1} parent=1 // pred_check_branch
      %21 = sbr.rel (0) target = $region9
    $region8: #{tpu_custom_call.1} parent=1 // pred_region
      %s23 = ssub.s32 128, 128
      %24 = vsyncadd [#allocation6], %s23
      %s26 = sshll.u32 [#allocation5], 4
      %s27 = int_to_ptr.vmem [resolvable:$true] %s26
      %29 = dma.hbm_to_vmem [thread:$0]  %s1, 128, %s27, [#allocation6]
    $region9: #{tpu_custom_call.1} parent=1 // pred_fallthru
      _
    // Predicated region
    $region10: #{tpu_custom_call.1} parent=1 // pred_check
      _
    $region11: #{tpu_custom_call.1} parent=1 // pred_check_branch
      %31 = sbr.rel (0) target = $region13
    $region12: #{tpu_custom_call.1} parent=1 // pred_region
      %32 = dma.done [#allocation3], 128
    $region13: #{tpu_custom_call.1} parent=1 // pred_fallthru
      _
    // Predicated region
    $region14: #{tpu_custom_call.1} parent=1 // pred_check
      _
    $region15: #{tpu_custom_call.1} parent=1 // pred_check_branch
      %34 = sbr.rel (0) target = $region17
    $region16: #{tpu_custom_call.1} parent=1 // pred_region
      %35 = dma.done [#allocation6], 128
    $region17: #{tpu_custom_call.1} parent=1 // pred_fallthru
      _
    %v36 = vld [vmem:[#allocation2] sm:$0xff]
    %v37 = vld [vmem:[#allocation5] sm:$0xff]
    %v38 = vand.u32 2147483647, %v36
    %v39 = vsub.f32 0.0, %v38
    %v40 = vmul.f32 %v39, 1.442695
    %v41 = vpow.pop %v40
    %v42 = vmax.f32 %v36, 0.0
    %v43 = vmul.f32 %v36, %v37
    %v44 = vsub.f32 %v42, %v43
    %v45 = vadd.f32 %v41, 1.0
    %v46 = vlog2.pop %v45
    %v47 = vmul.f32 %v46, 0.6931472
    %v48 = vmul.f32 -0.5, %v41
    %v49 = vadd.f32 %v48, 1.0
    %v50 = vmul.f32 %v49, %v41
    %v51 = vand.u32 2147483647, %v41
    %vm52 = vcmp.lt.f32.partialorder %v51, 0.0004427343
    %v53 = vsel %vm52, %v50, %v47
    %v54 = vadd.f32 %v44, %v53
    %v55 = vadd.f32 %v41, 1.0
    %v56 = vrcp.pop %v55
    %v57 = vmul.f32 %v55, %v56
    %v58 = vsub.f32 2.0, %v57
    %v59 = vmul.f32 %v56, %v58
    %vm60 = vcmp.ge.f32.partialorder %v36, 0.0
    %v61 = vmul.f32 %v41, %v59
    %v62 = vsel %vm60, %v59, %v61
    %v63 = vadd.f32 %v54, 0.0
    %v64 = vmul.f32 %v62, %v37
    %v65 = vadd.f32 %v64, 0.0
    %v66 = vadd.f32 %v62, 0.0
    %v67 = vadd.f32 %v37, 0.0
    %v68 = vadd.f32 %v63, 0.0
    %v69 = vadd.f32 %v65, 0.0
    %v70 = vadd.f32 %v66, 0.0
    %v71 = vadd.f32 %v67, 0.0
    %p72 = scmp.eq.s32.totalorder 0, 0
    // Predicated region
    $region18: #{tpu_custom_call.1} parent=1 // pred_check
      %p73 = pneg %p72
    $region19: #{tpu_custom_call.1} parent=1 // pred_check_branch
      %75 = sbr.rel (%p73) target = $region21
    $region20: #{tpu_custom_call.1} parent=1 // pred_region
      %76 = vst [vmem:[#allocation7] sm:$0xff] 0.0
      %77 = vst [vmem:[#allocation7 + $0x8] sm:$0xff] 0.0
      %78 = vst [vmem:[#allocation7 + $0x10] sm:$0xff] 0.0
      %79 = vst [vmem:[#allocation7 + $0x18] sm:$0xff] 0.0
    $region21: #{tpu_custom_call.1} parent=1 // pred_fallthru
      _
    %v80 = vld [vmem:[#allocation7] sm:$0xff]
    %v81 = vadd.f32 %v80, %v68
    %82 = vst [vmem:[#allocation7] sm:$0xff] %v81
    %s83 = scalar_lea.vmem [#allocation7], 8
    %v84 = vld [vmem:[%s83] sm:$0xff]
    %v85 = vadd.f32 %v84, %v69
    %86 = vst [vmem:[%s83] sm:$0xff] %v85
    %s87 = scalar_lea.vmem [#allocation7], 16
    %v88 = vld [vmem:[%s87] sm:$0xff]
    %v89 = vadd.f32 %v88, %v70
    %90 = vst [vmem:[%s87] sm:$0xff] %v89
    %s91 = scalar_lea.vmem [#allocation7], 24
    %v92 = vld [vmem:[%s91] sm:$0xff]
    %v93 = vadd.f32 %v92, %v71
    %94 = vst [vmem:[%s91] sm:$0xff] %v93
    // Predicated region
    $region22: #{tpu_custom_call.1} parent=1 // pred_check
      _
    $region23: #{tpu_custom_call.1} parent=1 // pred_check_branch
      %96 = sbr.rel (0) target = $region25
    $region24: #{tpu_custom_call.1} parent=1 // pred_region
      %s98 = ssub.s32 512, 512
      %99 = vsyncadd [#allocation4], %s98
      %s100 = sshll.u32 [#allocation7], 4
      %s101 = int_to_ptr.vmem [resolvable:$true] %s100
      %106 = dma.vmem_to_hbm [thread:$0]  %s101, 512, %s2, [#allocation4], 128, 128, 8
    $region25: #{tpu_custom_call.1} parent=1 // pred_fallthru
      _
    // Predicated region
    $region26: #{tpu_custom_call.1} parent=1 // pred_check
      _
    $region27: #{tpu_custom_call.1} parent=1 // pred_check_branch
      %108 = sbr.rel (0) target = $region29
    $region28: #{tpu_custom_call.1} parent=1 // pred_region
      %109 = dma.done [#allocation4], 512
    $region29: #{tpu_custom_call.1} parent=1 // pred_fallthru
      _
    %110 = vsyncpa [#allocation3], 1
    %111 = vsyncpa [#allocation6], 1
    %112 = vsyncpa [#allocation4], 1

</llo_original>
